<compile_context>
chip_gen: v7x
topology: tpu7x:2x2x1
jax: 0.10.0
libtpu: 0.0.40
codegen_flags: <defaults>
</compile_context>

<pallas_src>
import math

import jax
import jax.numpy as jnp
from jax.experimental import pallas as pl
from jax.experimental.pallas import tpu as pltpu


def _round_up(x, m):
    return (x + m - 1) // m * m


def _pick_divisor_tile(dim, cap, align):
    """Largest multiple of `align` that is <= cap and divides `dim`; else None."""
    t = (min(cap, dim) // align) * align
    while t >= align:
        if dim % t == 0:
            return t
        t -= align
    return None


# --------------------------- kernels ---------------------------------------


def _proj_kernel_single_k(x_ref, w_ref, b_ref, o_ref):
    # Single K step: no scratch, no accumulator round-trip.
    o_ref[...] = (
        jnp.dot(x_ref[...], w_ref[...], preferred_element_type=jnp.float32)
        + b_ref[...].astype(jnp.float32)
    ).astype(o_ref.dtype)


def _proj_kernel_multi_k(x_ref, w_ref, b_ref, o_ref, acc_ref):
    # x_ref: (tm, tk)  w_ref: (tk, tn)  b_ref: (1, tn)
    # o_ref: (tm, tn)  acc_ref: (tm, tn) f32, resident across the K axis.
    k = pl.program_id(2)
    part = jnp.dot(x_ref[...], w_ref[...], preferred_element_type=jnp.float32)

    @pl.when(k == 0)
    def _():
        acc_ref[...] = part          # init folded into first matmul

    @pl.when(k > 0)
    def _():
        acc_ref[...] += part

    @pl.when(k == pl.num_programs(2) - 1)
    def _():
        o_ref[...] = (
            acc_ref[...] + b_ref[...].astype(jnp.float32)
        ).astype(o_ref.dtype)


# --------------------------- wrapper ----------------------------------------


def projection_layer(data, weight_t, bias, *, tm=None, tn=None, tk=None,
                     out_dtype=None, stream_dtype=None):
    """data: (..., d_model); weight_t: (d_model, vocab); bias: (vocab,)."""
    *lead, d_model = data.shape
    assert weight_t.shape[0] == d_model
    vocab = weight_t.shape[1]
    out_dtype = out_dtype or data.dtype

    x2d = data.reshape(-1, d_model)
    M = x2d.shape[0]

    # Optional low-precision streaming (accumulation stays f32 in the kernel).
    if stream_dtype is not None:
        x2d = x2d.astype(stream_dtype)
        weight_t = weight_t.astype(stream_dtype)

    itemsize = jnp.dtype(x2d.dtype).itemsize
    pack = max(8, 32 // itemsize)           # sublane pack: 8 f32, 16 bf16, 32 int8

    # ---- tm: big for prefill/training, pack-aligned for decode-sized M -------
    if tm is None:
        tm = min(512, _round_up(M, pack))
    gm = pl.cdiv(M, tm)
    M_pad = gm * tm

    # ---- tn: prefer a divisor of vocab (no weight pad copy); keep >= 2 blocks
    #      on a parallel axis for the 2 TensorCores on v7x when gm == 1 ---------
    if tn is None:
        tn_cap = 1024
        if gm == 1 and vocab >= 256:
            tn_cap = min(tn_cap, max(128, (vocab // 2) // 128 * 128))
        tn = _pick_divisor_tile(vocab, tn_cap, 128)
        if tn is None:
            # Full-dim block is layout-legal and avoids padding for small vocab;
            # otherwise fall back to a padded lane-dense tile.
            tn = vocab if vocab <= 2048 else tn_cap
    gn = pl.cdiv(vocab, tn)
    N_pad = gn * tn

    # ---- tk: single K step when d_model fits; otherwise minimal-pad split -----
    if tk is None:
        if d_model <= 2048:
            tk = d_model
        else:
            tk = (_pick_divisor_tile(d_model, 2048, 256)
                  or _pick_divisor_tile(d_model, 2048, 128))
            if tk is None:
                kt = pl.cdiv(d_model, 2048)
                tk = _round_up(pl.cdiv(d_model, kt), 256)
    gk = pl.cdiv(d_model, tk)
    K_pad = gk * tk

    # ---- padding: activations cheaply on M/K; weight/bias only as a fallback --
    if M_pad != M or K_pad != d_model:
        x2d = jnp.pad(x2d, ((0, M_pad - M), (0, K_pad - d_model)))
    w = weight_t
    if K_pad != d_model or N_pad != vocab:
        # Only reached when no divisor tile exists (rare); K zero-pad keeps the
        # accumulation exact, N pad is sliced off below.
        w = jnp.pad(w, ((0, K_pad - d_model), (0, N_pad - vocab)))
    b2d = bias.reshape(1, vocab)
    if N_pad != vocab:
        b2d = jnp.pad(b2d, ((0, 0), (0, N_pad - vocab)))

    # ---- VMEM budget (double-buffered tiles + bias + optional f32 acc) --------
    def nbytes(shape, dt):
        return math.prod(shape) * jnp.dtype(dt).itemsize

    vmem_needed = (
        2 * nbytes((tm, tk), x2d.dtype)
        + 2 * nbytes((tk, tn), w.dtype)
        + 2 * nbytes((tm, tn), out_dtype)
        + 2 * nbytes((1, tn), b2d.dtype)
    )
    if gk > 1:
        vmem_needed += nbytes((tm, tn), jnp.float32)

    try:
        vmem_cap = int(pltpu.get_tpu_info().vmem_capacity_bytes)
    except Exception:
        vmem_cap = 64 << 20                 # conservative (v7x per-TC VMEM)
    vmem_limit = int(min(int(0.85 * vmem_cap),
                         max(vmem_needed + (8 << 20), 32 << 20)))

    # ---- cost estimate with *streamed* traffic (weight re-read gm times, etc.)
    cost = pl.CostEstimate(
        flops=2 * M * d_model * vocab,
        transcendentals=0,
        bytes_accessed=(
            gm * K_pad * N_pad * jnp.dtype(w.dtype).itemsize
            + gn * M_pad * K_pad * jnp.dtype(x2d.dtype).itemsize
            + gm * N_pad * jnp.dtype(b2d.dtype).itemsize
            + M_pad * N_pad * jnp.dtype(out_dtype).itemsize
        ),
    )

    if gk == 1:
        kernel = _proj_kernel_single_k
        grid = (gm, gn)
        in_specs = [
            pl.BlockSpec((tm, tk), lambda i, j: (i, 0)),
            pl.BlockSpec((tk, tn), lambda i, j: (0, j)),
            pl.BlockSpec((1, tn), lambda i, j: (0, j)),
        ]
        out_spec = pl.BlockSpec((tm, tn), lambda i, j: (i, j))
        scratch = []
        dims = ("parallel", "parallel")
    else:
        kernel = _proj_kernel_multi_k
        grid = (gm, gn, gk)
        in_specs = [
            pl.BlockSpec((tm, tk), lambda i, j, k: (i, k)),
            pl.BlockSpec((tk, tn), lambda i, j, k: (k, j)),
            pl.BlockSpec((1, tn), lambda i, j, k: (0, j)),
        ]
        out_spec = pl.BlockSpec((tm, tn), lambda i, j, k: (i, j))
        scratch = [pltpu.VMEM((tm, tn), jnp.float32)]
        dims = ("parallel", "parallel", "arbitrary")

    out2d = pl.pallas_call(
        kernel,
        out_shape=jax.ShapeDtypeStruct((M_pad, N_pad), out_dtype),
        grid_spec=pltpu.PrefetchScalarGridSpec(
            num_scalar_prefetch=0,
            grid=grid,
            in_specs=in_specs,
            out_specs=out_spec,
            scratch_shapes=scratch,
        ),
        compiler_params=pltpu.CompilerParams(
            dimension_semantics=dims,
            vmem_limit_bytes=vmem_limit,
        ),
        cost_estimate=cost,
    )(x2d, w, b2d)

    out2d = out2d[:M, :vocab]
    return out2d.reshape(*lead, vocab)


if __name__ == "__main__":
    key = jax.random.PRNGKey(0)

    # ---------------- Check 1: module-default small shapes (f32) --------------
    batch, seq, d_model, vocab_size = 2, 8, 32, 128
    kx, kw, kb = jax.random.split(key, 3)
    bound = 1.0 / jnp.sqrt(jnp.float32(d_model))
    weight_t = jax.random.uniform(
        kw, (d_model, vocab_size), jnp.float32, minval=-bound, maxval=bound
    )
    bias = jax.random.uniform(
        kb, (vocab_size,), jnp.float32, minval=-bound, maxval=bound
    )
    data = jax.random.normal(kx, (batch, seq, d_model), jnp.float32)

    out = jax.block_until_ready(projection_layer(data, weight_t, bias))
    ref = data @ weight_t + bias
    assert out.shape == (batch, seq, vocab_size)
    assert jnp.allclose(out, ref, atol=1e-5, rtol=1e-5)

    # ---- Check 2: non-aligned shapes, forced multi-block grid + K accumulation
    b2s, s2, dm2, v2 = 2, 20, 200, 200   # deliberately non-aligned -> pad fallback
    kx2, kw2, kb2 = jax.random.split(jax.random.PRNGKey(1), 3)
    bnd2 = 1.0 / jnp.sqrt(jnp.float32(dm2))
    w2 = jax.random.uniform(kw2, (dm2, v2), jnp.float32, minval=-bnd2, maxval=bnd2)
    bb2 = jax.random.uniform(kb2, (v2,), jnp.float32, minval=-bnd2, maxval=bnd2)
    d2 = jax.random.normal(kx2, (b2s, s2, dm2), jnp.float32)
    out2 = jax.block_until_ready(
        projection_layer(d2, w2, bb2, tm=16, tn=128, tk=128)  # 3x2x2 grid
    )
    ref2 = d2 @ w2 + bb2
    assert out2.shape == (b2s, s2, v2)
    assert jnp.allclose(out2, ref2, atol=1e-4, rtol=1e-4)

    # ---- Check 3: auto tiles, d_model > 2048 -> multi-K, no weight pad copy ---
    m3, dm3, v3 = 8, 2304, 384            # tk=768 divides d_model, tn=128 divides vocab
    kx3, kw3, kb3 = jax.random.split(jax.random.PRNGKey(2), 3)
    bnd3 = 1.0 / jnp.sqrt(jnp.float32(dm3))
    w3 = jax.random.uniform(kw3, (dm3, v3), jnp.float32, minval=-bnd3, maxval=bnd3)
    bb3 = jax.random.uniform(kb3, (v3,), jnp.float32, minval=-bnd3, maxval=bnd3)
    d3 = jax.random.normal(kx3, (m3, dm3), jnp.float32)
    out3 = jax.block_until_ready(projection_layer(d3, w3, bb3))
    ref3 = d3 @ w3 + bb3
    assert out3.shape == (m3, v3)
    assert jnp.allclose(out3, ref3, atol=1e-3, rtol=1e-3)

    # ---- Check 4: bf16 streaming of f32 params (HBM-bound LM-head config) -----
    out_bf = jax.block_until_ready(
        projection_layer(data, weight_t, bias, stream_dtype=jnp.bfloat16,
                         out_dtype=jnp.float32)
    )
    assert out_bf.dtype == jnp.float32
    assert jnp.allclose(out_bf, ref, atol=5e-2, rtol=5e-2)

    print("KERNEL_OK")
</pallas_src>

<mosaic_0001>
module attributes {stable_mosaic.version = 11 : i64} {
  func.func @_proj_kernel_single_k(%arg0: i32, %arg1: i32, %arg2: memref<16x32xf32, #tpu.memory_space<vmem>>, %arg3: memref<32x128xf32, #tpu.memory_space<vmem>>, %arg4: memref<1x128xf32, #tpu.memory_space<vmem>>, %arg5: memref<16x128xf32, #tpu.memory_space<vmem>>) attributes {dimension_semantics = [#tpu.dimension_semantics<parallel>, #tpu.dimension_semantics<parallel>], iteration_bounds = array<i64: 1, 1>, scalar_prefetch = 0 : i64, scratch_operands = 0 : i64, tpu.core_type = #tpu.core_type<tc>, window_params = [{transform_indices = @transform_0, window_bounds = array<i64: 16, 32>}, {transform_indices = @transform_1, window_bounds = array<i64: 32, 128>}, {transform_indices = @transform_2, window_bounds = array<i64: 1, 128>}, {transform_indices = @transform_3, window_bounds = array<i64: 16, 128>}]} {
    %c0 = arith.constant 0 : index
    %c0_0 = arith.constant 0 : index
    %0 = vector.load %arg2[%c0, %c0_0] : memref<16x32xf32, #tpu.memory_space<vmem>>, vector<16x32xf32>
    %c0_1 = arith.constant 0 : index
    %c0_2 = arith.constant 0 : index
    %1 = vector.load %arg3[%c0_1, %c0_2] : memref<32x128xf32, #tpu.memory_space<vmem>>, vector<32x128xf32>
    %cst = arith.constant dense<0.000000e+00> : vector<16x128xf32>
    %2 = tpu.matmul %0, %1, %cst {dimension_numbers = #tpu.dot_dimension_numbers<[1], [0], [0], [1], [0, 0, 1, 1], [], []>} : vector<16x32xf32>, vector<32x128xf32>, vector<16x128xf32> -> vector<16x128xf32>
    %c0_3 = arith.constant 0 : index
    %c0_4 = arith.constant 0 : index
    %3 = vector.load %arg4[%c0_3, %c0_4] : memref<1x128xf32, #tpu.memory_space<vmem>>, vector<1x128xf32>
    %4 = vector.broadcast %3 : vector<1x128xf32> to vector<16x128xf32>
    %5 = arith.addf %2, %4 : vector<16x128xf32>
    %c0_5 = arith.constant 0 : index
    %c0_6 = arith.constant 0 : index
    %6 = vector.load %arg5[%c0_5, %c0_6] : memref<16x128xf32, #tpu.memory_space<vmem>>, vector<16x128xf32>
    tpu.vector_store %arg5[%c0_5, %c0_6], %5 {strides = array<i32>} : memref<16x128xf32, #tpu.memory_space<vmem>>, vector<16x128xf32>,
    return
  }
  func.func @transform_0(%arg0: i32, %arg1: i32) -> (i32, i32) {
    %c0_i32 = arith.constant 0 : i32
    %c0_i32_0 = arith.constant 0 : i32
    return %arg0, %c0_i32 : i32, i32
  }
  func.func @transform_1(%arg0: i32, %arg1: i32) -> (i32, i32) {
    %c0_i32 = arith.constant 0 : i32
    %c0_i32_0 = arith.constant 0 : i32
    return %c0_i32, %arg1 : i32, i32
  }
  func.func @transform_2(%arg0: i32, %arg1: i32) -> (i32, i32) {
    %c0_i32 = arith.constant 0 : i32
    %c0_i32_0 = arith.constant 0 : i32
    return %c0_i32, %arg1 : i32, i32
  }
  func.func @transform_3(%arg0: i32, %arg1: i32) -> (i32, i32) {
    %c0_i32 = arith.constant 0 : i32
    return %arg0, %arg1 : i32, i32
  }
}

</mosaic_0001>

<llo_original>
// kernel: tpu_custom_call.1
$region0: #{tpu_custom_call.1}
  #allocation0 [shape = 'u32[]', space=smem, size = 0x4, offset = 0x4, fixed_abs, tag = 'smem constant byte address 0x4 - core index']
  #allocation1 [shape = 'u32[144,128]{1,0:T(1,128)}', space=vmem, size = 0x12000, scoped, tag = 'internal scratch']
  %s0 = inlined_call_operand.hbm [shape: f32[16,32], index: 0, kind: input, shape index: {}]
  %s1 = inlined_call_operand.hbm [shape: f32[32,128], index: 1, kind: input, shape index: {}]
  %s2 = inlined_call_operand.vmem [shape: f32[1,128], index: 2, kind: input, shape index: {}]
  %s3 = inlined_call_operand.hbm [shape: f32[16,128], index: 3, kind: output, shape index: {}]
  %s4 = sld [smem:[#allocation0]]
  $region30: #{tpu_custom_call.1} parent=0
    _
  %s6 = ssub.s32 1, %s4
  %s7 = scalar_select 0, %s6, %s4
  $region1: #{tpu_custom_call.1} parent=0
    #allocation2 [shape = 'u8[8192]{0}', space=vmem, size = 0x2000, scoped, tag = 'input window, operand 0, single buffered']
    #allocation3 [shape = 's32[1]{0}', space=sflag, size = 0x4, scoped, tag = 'scoped memory for tpu_custom_call.1']
    #allocation4 [shape = 's32[1]{0}', space=sflag, size = 0x4, scoped, tag = 'scoped memory for tpu_custom_call.1']
    #allocation5 [shape = 'u8[16384]{0}', space=vmem, size = 0x4000, scoped, tag = 'input window, operand 1, single buffered']
    #allocation6 [shape = 's32[1]{0}', space=sflag, size = 0x4, scoped, tag = 'scoped memory for tpu_custom_call.1']
    #allocation7 [shape = 'u8[8192]{0}', space=vmem, size = 0x2000, scoped, tag = 'output window, operand 0, single buffered']
    %8 = vsyncpa [#allocation3], 0
    %9 = vsyncpa [#allocation6], 0
    %10 = vsyncpa [#allocation4], 0
    // Predicated region
    $region2: #{tpu_custom_call.1} parent=1 // pred_check
      _
    $region3: #{tpu_custom_call.1} parent=1 // pred_check_branch
      %12 = sbr.rel (0) target = $region5
    $region4: #{tpu_custom_call.1} parent=1 // pred_region
      %s14 = ssub.s32 256, 256
      %15 = vsyncadd [#allocation3], %s14
      %s16 = sshll.u32 [#allocation2], 4
      %s17 = int_to_ptr.vmem [resolvable:$true] %s16
      %22 = dma.hbm_to_vmem [thread:$0]  %s0, 256, %s17, [#allocation3], 128, 128, 8
    $region5: #{tpu_custom_call.1} parent=1 // pred_fallthru
      _
    // Predicated region
    $region6: #{tpu_custom_call.1} parent=1 // pred_check
      _
    $region7: #{tpu_custom_call.1} parent=1 // pred_check_branch
      %24 = sbr.rel (0) target = $region9
    $region8: #{tpu_custom_call.1} parent=1 // pred_region
      %s26 = ssub.s32 512, 512
      %27 = vsyncadd [#allocation6], %s26
      %s28 = sshll.u32 [#allocation5], 4
      %s29 = int_to_ptr.vmem [resolvable:$true] %s28
      %34 = dma.hbm_to_vmem [thread:$0]  %s1, 512, %s29, [#allocation6], 128, 128, 8
    $region9: #{tpu_custom_call.1} parent=1 // pred_fallthru
      _
    // Predicated region
    $region10: #{tpu_custom_call.1} parent=1 // pred_check
      _
    $region11: #{tpu_custom_call.1} parent=1 // pred_check_branch
      %36 = sbr.rel (0) target = $region13
    $region12: #{tpu_custom_call.1} parent=1 // pred_region
      _
    $region13: #{tpu_custom_call.1} parent=1 // pred_fallthru
      _
    // Predicated region
    $region14: #{tpu_custom_call.1} parent=1 // pred_check
      _
    $region15: #{tpu_custom_call.1} parent=1 // pred_check_branch
      %38 = sbr.rel (0) target = $region17
    $region16: #{tpu_custom_call.1} parent=1 // pred_region
      %39 = dma.done [#allocation3], 256
    $region17: #{tpu_custom_call.1} parent=1 // pred_fallthru
      _
    // Predicated region
    $region18: #{tpu_custom_call.1} parent=1 // pred_check
      _
    $region19: #{tpu_custom_call.1} parent=1 // pred_check_branch
      %41 = sbr.rel (0) target = $region21
    $region20: #{tpu_custom_call.1} parent=1 // pred_region
      %42 = dma.done [#allocation6], 512
    $region21: #{tpu_custom_call.1} parent=1 // pred_fallthru
      _
    %v43 = vld [vmem:[#allocation2] sm:$0xff]
    %v44 = vld [vmem:[#allocation2 + $0x8] sm:$0xff]
    %v45 = vld [vmem:[#allocation5] sm:$0xff]
    %v46 = vld [vmem:[#allocation5 + $0x8] sm:$0xff]
    %v47 = vld [vmem:[#allocation5 + $0x10] sm:$0xff]
    %v48 = vld [vmem:[#allocation5 + $0x18] sm:$0xff]
    %v49 = vld [vmem:[%s2] sm:$0x1]
    %v51 = vlaneseq
    %v52 = vshrl.u32 %v51, 7
    %v53 = vsub.s32 0, %v52
    %v54 = vrot.slane %v49, %v53
    %vm56 = vcmask 261120
    %v58 = vsel %vm56, %v43, 0
    %v61 = vsel %vm56, %v44, 0
    %63 = vmatprep.subr.mxu0 0.0
    %64 = vmatpush1.msra.mxu0 %v45
    %65 = vmatprep.subr.mxu0 0.0
    %66 = vmatpush1.msra.mxu0 %v46
    %67 = vmatprep.subr.mxu0 0.0
    %68 = vmatpush1.msra.mxu0 %v47
    %69 = vmatprep.subr.mxu0 0.0
    %70 = vmatpush1.msra.mxu0 %v48
    %71 = vmatprep.subr.mxu0 0.0
    %72 = vmatpush1.msra.mxu0 0.0
    %73 = vmatprep.subr.mxu0 0.0
    %74 = vmatpush1.msra.mxu0 0.0
    %75 = vmatprep.subr.mxu0 0.0
    %76 = vmatpush1.msra.mxu0 0.0
    %77 = vmatprep.subr.mxu0 0.0
    %78 = vmatpush1.msra.mxu0 0.0
    %79 = vmatprep.subr.mxu0 0.0
    %80 = vmatpush1.msra.mxu0 0.0
    %81 = vmatprep.subr.mxu0 0.0
    %82 = vmatpush1.msra.mxu0 0.0
    %83 = vmatprep.subr.mxu0 0.0
    %84 = vmatpush1.msra.mxu0 0.0
    %85 = vmatprep.subr.mxu0 0.0
    %86 = vmatpush1.msra.mxu0 0.0
    %87 = vmatprep.subr.mxu0 0.0
    %88 = vmatpush1.msra.mxu0 0.0
    %89 = vmatprep.subr.mxu0 0.0
    %90 = vmatpush1.msra.mxu0 0.0
    %91 = vmatprep.subr.mxu0 0.0
    %92 = vmatpush1.msra.mxu0 0.0
    %93 = vmatprep.subr.mxu0 0.0
    %94 = vmatpush1.msra.mxu0 0.0
    %95 = vmatprep.subr.mxu0 0.0
    %96 = vmatpush1.msra.mxu0 0.0
    %97 = vmatprep.subr.mxu0 0.0
    %98 = vmatpush1.msra.mxu0 0.0
    %99 = vmatprep.subr.mxu0 0.0
    %100 = vmatpush1.msra.mxu0 0.0
    %101 = vmatprep.subr.mxu0 0.0
    %102 = vmatpush1.msra.mxu0 0.0
    %103 = vmatprep.subr.mxu0 0.0
    %104 = vmatpush1.msra.mxu0 0.0
    %105 = vmatprep.subr.mxu0 0.0
    %106 = vmatpush1.msra.mxu0 0.0
    %107 = vmatprep.subr.mxu0 0.0
    %108 = vmatpush1.msra.mxu0 0.0
    %109 = vmatprep.subr.mxu0 0.0
    %110 = vmatpush1.msra.mxu0 0.0
    %111 = vmatprep.subr.mxu0 0.0
    %112 = vmatpush1.msra.mxu0 0.0
    %113 = vmatprep.subr.mxu0 0.0
    %114 = vmatpush1.msra.mxu0 0.0
    %115 = vmatprep.subr.mxu0 0.0
    %116 = vmatpush1.msra.mxu0 0.0
    %117 = vmatprep.subr.mxu0 0.0
    %118 = vmatpush1.msra.mxu0 0.0
    %119 = vmatprep.subr.mxu0 0.0
    %120 = vmatpush1.msra.mxu0 0.0
    %121 = vmatprep.subr.mxu0 0.0
    %122 = vmatpush1.msra.mxu0 0.0
    %123 = vmatprep.subr.mxu0 0.0
    %124 = vmatpush1.msra.mxu0 0.0
    %125 = vmatprep.subr.mxu0 0.0
    %126 = vmatpush1.msra.mxu0 0.0
    %127 = vmatprep.mubr.f32.mxu0 0.0
    %128 = vmatmul.mubr.f32.gmra.mrb[0].mxu0 %v58
    %v129 = vpop.f32.mrb[0].mxu0
    %v130 = vadd.f32 %v54, %v129
    %v131 = vpop.f32.mrb[0].mxu0
    %132 = vmatprep.mubr.f32.mxu0 0.0
    %133 = vmatmul.mubr.f32.gmra.mrb[0].mxu0 %v61
    %v134 = vpop.f32.mrb[0].mxu0
    %v135 = vadd.f32 %v54, %v134
    %v136 = vpop.f32.mrb[0].mxu0
    %137 = vdwg.mxu0
    %138 = vst [vmem:[#allocation7] sm:$0xff] %v130
    %139 = vst [vmem:[#allocation7 + $0x8] sm:$0xff] %v135
    // Predicated region
    $region22: #{tpu_custom_call.1} parent=1 // pred_check
      _
    $region23: #{tpu_custom_call.1} parent=1 // pred_check_branch
      %141 = sbr.rel (0) target = $region25
    $region24: #{tpu_custom_call.1} parent=1 // pred_region
      %s143 = ssub.s32 256, 256
      %144 = vsyncadd [#allocation4], %s143
      %s145 = sshll.u32 [#allocation7], 4
      %s146 = int_to_ptr.vmem [resolvable:$true] %s145
      %151 = dma.vmem_to_hbm [thread:$0]  %s146, 256, %s3, [#allocation4], 128, 128, 8
    $region25: #{tpu_custom_call.1} parent=1 // pred_fallthru
      _
    // Predicated region
    $region26: #{tpu_custom_call.1} parent=1 // pred_check
      _
    $region27: #{tpu_custom_call.1} parent=1 // pred_check_branch
      %153 = sbr.rel (0) target = $region29
    $region28: #{tpu_custom_call.1} parent=1 // pred_region
      %154 = dma.done [#allocation4], 256
    $region29: #{tpu_custom_call.1} parent=1 // pred_fallthru
      _
    %155 = vsyncpa [#allocation3], 1
    %156 = vsyncpa [#allocation6], 1
    %157 = vsyncpa [#allocation4], 1

</llo_original>
